<compile_context>
chip_gen: v7x
topology: tpu7x:2x2x1
jax: 0.10.0
libtpu: 0.0.40
codegen_flags: <defaults>
</compile_context>

<pallas_src>
import functools

import jax
import jax.numpy as jnp
from jax.experimental import pallas as pl
from jax.experimental.pallas import tpu as pltpu


def _round_up(n, m):
    return ((n + m - 1) // m) * m


def entity_embedding_kernel(
    xT_ref,       # [in_dim,      TB]   (batch on lanes)
    zT_ref,       # [part_in_dim, TB]
    w_in_xT_ref,  # [h0, in_dim]
    w_ezT_ref,    # [h0, part_in_dim]   (= W_in_z @ W_embed, embedding folded in)
    b_in_ref,     # [h0, 1]
    w_hT_ref,     # [h1, h0]
    b_h_ref,      # [h1, 1]
    w_outT_ref,   # [out_dim, h1]
    o_ref,        # [out_dim, TB]       lane-dense output slab
):
    xT = xT_ref[...]
    zT = zT_ref[...]

    # input layer (ln_embed already folded into w_ez), then sigmoid
    h = (
        jnp.dot(w_in_xT_ref[...], xT, preferred_element_type=jnp.float32)
        + jnp.dot(w_ezT_ref[...], zT, preferred_element_type=jnp.float32)
        + b_in_ref[...]
    )
    h = jax.nn.sigmoid(h)

    # hidden layer + sigmoid
    h = jnp.dot(w_hT_ref[...], h, preferred_element_type=jnp.float32) + b_h_ref[...]
    h = jax.nn.sigmoid(h)

    # ln_out (no bias); result is [out_dim, TB] -> wide unmasked store
    o_ref[...] = jnp.dot(
        w_outT_ref[...], h, preferred_element_type=jnp.float32
    ).astype(o_ref.dtype)


@functools.partial(jax.jit, static_argnames=("block_b",))
def entity_embedding_forward(x, z, params, block_b=2048):
    """x: [B, in_dim], z: [B, part_in_dim] -> [B, out_dim]."""
    B, in_dim = x.shape
    part_in_dim = z.shape[1]

    # Params are stored in PyTorch layout: weight = [out_features, in_features].
    w_embed = params["w_embed"]   # [part_out_dim, part_in_dim]
    w_in = params["w_in"]         # [h0, in_dim + part_out_dim]
    b_in = params["b_in"]         # [h0]
    w_h = params["w_h"]           # [h1, h0]
    b_h = params["b_h"]           # [h1]
    w_out = params["w_out"]       # [out_dim, h1]

    h0 = w_in.shape[0]
    h1 = w_h.shape[0]
    out_dim = w_out.shape[0]

    # Fold ln_embed into ln_in (no nonlinearity between them):
    #   (z @ W_embed^T) @ W_in_z^T == z @ (W_in_z @ W_embed)^T
    w_in_x = w_in[:, :in_dim]            # [h0, in_dim]
    w_ez = w_in[:, in_dim:] @ w_embed    # [h0, part_in_dim]
    b_in_c = b_in.reshape(h0, 1)
    b_h_c = b_h.reshape(h1, 1)

    # Batch tiling: lane-dense (multiple of 128), large tiles, zero-padded tail.
    block_eff = min(block_b, _round_up(B, 128))
    block_eff = _round_up(block_eff, 128)
    B_pad = _round_up(B, block_eff)
    grid = (B_pad // block_eff,)

    # Feature-major (transposed) activations so batch sits on the lane axis.
    xT = jnp.pad(x.T.astype(jnp.float32), ((0, 0), (0, B_pad - B)))
    zT = jnp.pad(z.T.astype(jnp.float32), ((0, 0), (0, B_pad - B)))

    full = lambda i: (0, 0)   # weights / biases: resident across grid steps
    tile = lambda i: (0, i)   # activations/output: tiled along lane-major batch

    outT = pl.pallas_call(
        entity_embedding_kernel,
        out_shape=jax.ShapeDtypeStruct((out_dim, B_pad), jnp.float32),
        grid_spec=pltpu.PrefetchScalarGridSpec(
            num_scalar_prefetch=0,
            grid=grid,
            in_specs=[
                pl.BlockSpec((in_dim, block_eff), tile),
                pl.BlockSpec((part_in_dim, block_eff), tile),
                pl.BlockSpec((h0, in_dim), full),
                pl.BlockSpec((h0, part_in_dim), full),
                pl.BlockSpec((h0, 1), full),
                pl.BlockSpec((h1, h0), full),
                pl.BlockSpec((h1, 1), full),
                pl.BlockSpec((out_dim, h1), full),
            ],
            out_specs=pl.BlockSpec((out_dim, block_eff), tile),
        ),
        compiler_params=pltpu.CompilerParams(
            dimension_semantics=("parallel",),
        ),
    )(xT, zT, w_in_x, w_ez, b_in_c, w_h, b_h_c, w_out)

    return outT[:, :B].T   # back to [B, out_dim]


def reference_forward(x, z, params):
    """Pure-JAX reference mirroring the PyTorch module (PyTorch weight layout)."""
    z_emb = z @ params["w_embed"].T
    inp = jnp.hstack((x, z_emb))
    h = jax.nn.sigmoid(inp @ params["w_in"].T + params["b_in"])
    h = jax.nn.sigmoid(h @ params["w_h"].T + params["b_h"])
    return h @ params["w_out"].T


def init_params(key, in_dim, hidden_dim, out_dim, part_in_dim, part_out_dim):
    """Deterministic init (uniform, PyTorch-style fan_in bounds), PyTorch layout
    weight = [out_features, in_features]."""
    assert len(hidden_dim) == 2  # kernel specialized to one hidden Linear
    ks = jax.random.split(key, 6)

    def unif(k, shape, fan_in):
        bound = 1.0 / jnp.sqrt(fan_in)
        return jax.random.uniform(k, shape, jnp.float32, -bound, bound)

    h0, h1 = hidden_dim
    return {
        "w_embed": unif(ks[0], (part_out_dim, part_in_dim), part_in_dim),
        "w_in":    unif(ks[1], (h0, in_dim + part_out_dim), in_dim + part_out_dim),
        "b_in":    unif(ks[2], (h0,), in_dim + part_out_dim),
        "w_h":     unif(ks[3], (h1, h0), h0),
        "b_h":     unif(ks[4], (h1,), h0),
        "w_out":   unif(ks[5], (out_dim, h1), h1),
    }


if __name__ == "__main__":
    # small, module-consistent shapes
    in_dim = 2          # spatial coords
    part_in_dim = 4     # one-hot subdomain id
    part_out_dim = 2    # embedding width
    hidden_dim = [32, 32]
    out_dim = 1
    batch = 64

    key = jax.random.PRNGKey(0)
    kx, kz, kp = jax.random.split(key, 3)

    x = jax.random.normal(kx, (batch, in_dim), jnp.float32)
    z_idx = jax.random.randint(kz, (batch,), 0, part_in_dim)
    z = jax.nn.one_hot(z_idx, part_in_dim, dtype=jnp.float32)

    params = init_params(kp, in_dim, hidden_dim, out_dim, part_in_dim, part_out_dim)

    out = entity_embedding_forward(x, z, params)
    out = jax.block_until_ready(out)
    ref = reference_forward(x, z, params)
    assert out.shape == (batch, out_dim)
    assert jnp.allclose(out, ref, atol=1e-5, rtol=1e-5), "mismatch vs reference"

    # batch not a multiple of 128 exercises the zero-padded tail path
    batch2 = 200
    k2x, k2z = jax.random.split(jax.random.PRNGKey(1))
    x2 = jax.random.normal(k2x, (batch2, in_dim), jnp.float32)
    z2 = jax.nn.one_hot(
        jax.random.randint(k2z, (batch2,), 0, part_in_dim), part_in_dim,
        dtype=jnp.float32)
    out2 = jax.block_until_ready(entity_embedding_forward(x2, z2, params))
    ref2 = reference_forward(x2, z2, params)
    assert out2.shape == (batch2, out_dim)
    assert jnp.allclose(out2, ref2, atol=1e-5, rtol=1e-5), "mismatch vs reference (tail)"

    print("KERNEL_OK")
</pallas_src>

<mosaic_0001>
module attributes {stable_mosaic.version = 11 : i64} {
  func.func @entity_embedding_kernel(%arg0: i32, %arg1: memref<2x128xf32, #tpu.memory_space<vmem>>, %arg2: memref<4x128xf32, #tpu.memory_space<vmem>>, %arg3: memref<32x2xf32, #tpu.memory_space<vmem>>, %arg4: memref<32x4xf32, #tpu.memory_space<vmem>>, %arg5: memref<32x1xf32, #tpu.memory_space<vmem>>, %arg6: memref<32x32xf32, #tpu.memory_space<vmem>>, %arg7: memref<32x1xf32, #tpu.memory_space<vmem>>, %arg8: memref<1x32xf32, #tpu.memory_space<vmem>>, %arg9: memref<1x128xf32, #tpu.memory_space<vmem>>) attributes {dimension_semantics = [#tpu.dimension_semantics<parallel>], iteration_bounds = array<i64: 1>, scalar_prefetch = 0 : i64, scratch_operands = 0 : i64, tpu.core_type = #tpu.core_type<tc>, window_params = [{transform_indices = @transform_0, window_bounds = array<i64: 2, 128>}, {transform_indices = @transform_1, window_bounds = array<i64: 4, 128>}, {pipeline_mode = #tpu.pipeline_mode<synchronous>, transform_indices = @transform_2, window_bounds = array<i64: 32, 2>}, {pipeline_mode = #tpu.pipeline_mode<synchronous>, transform_indices = @transform_3, window_bounds = array<i64: 32, 4>}, {pipeline_mode = #tpu.pipeline_mode<synchronous>, transform_indices = @transform_4, window_bounds = array<i64: 32, 1>}, {pipeline_mode = #tpu.pipeline_mode<synchronous>, transform_indices = @transform_5, window_bounds = array<i64: 32, 32>}, {pipeline_mode = #tpu.pipeline_mode<synchronous>, transform_indices = @transform_6, window_bounds = array<i64: 32, 1>}, {pipeline_mode = #tpu.pipeline_mode<synchronous>, transform_indices = @transform_7, window_bounds = array<i64: 1, 32>}, {transform_indices = @transform_8, window_bounds = array<i64: 1, 128>}]} {
    %c0 = arith.constant 0 : index
    %c0_0 = arith.constant 0 : index
    %0 = vector.load %arg1[%c0, %c0_0] : memref<2x128xf32, #tpu.memory_space<vmem>>, vector<2x128xf32>
    %c0_1 = arith.constant 0 : index
    %c0_2 = arith.constant 0 : index
    %1 = vector.load %arg2[%c0_1, %c0_2] : memref<4x128xf32, #tpu.memory_space<vmem>>, vector<4x128xf32>
    %c0_3 = arith.constant 0 : index
    %c0_4 = arith.constant 0 : index
    %2 = vector.load %arg3[%c0_3, %c0_4] : memref<32x2xf32, #tpu.memory_space<vmem>>, vector<32x2xf32>
    %cst = arith.constant dense<0.000000e+00> : vector<32x128xf32>
    %3 = tpu.matmul %2, %0, %cst {dimension_numbers = #tpu.dot_dimension_numbers<[1], [0], [0], [1], [0, 0, 1, 1], [], []>} : vector<32x2xf32>, vector<2x128xf32>, vector<32x128xf32> -> vector<32x128xf32>
    %c0_5 = arith.constant 0 : index
    %c0_6 = arith.constant 0 : index
    %4 = vector.load %arg4[%c0_5, %c0_6] : memref<32x4xf32, #tpu.memory_space<vmem>>, vector<32x4xf32>
    %cst_7 = arith.constant dense<0.000000e+00> : vector<32x128xf32>
    %5 = tpu.matmul %4, %1, %cst_7 {dimension_numbers = #tpu.dot_dimension_numbers<[1], [0], [0], [1], [0, 0, 1, 1], [], []>} : vector<32x4xf32>, vector<4x128xf32>, vector<32x128xf32> -> vector<32x128xf32>
    %6 = arith.addf %3, %5 : vector<32x128xf32>
    %c0_8 = arith.constant 0 : index
    %c0_9 = arith.constant 0 : index
    %7 = vector.load %arg5[%c0_8, %c0_9] : memref<32x1xf32, #tpu.memory_space<vmem>>, vector<32x1xf32>
    %8 = vector.broadcast %7 : vector<32x1xf32> to vector<32x128xf32>
    %9 = arith.addf %6, %8 : vector<32x128xf32>
    %10 = arith.negf %9 : vector<32x128xf32>
    %11 = math.exp %10 : vector<32x128xf32>
    %cst_10 = arith.constant 1.000000e+00 : f32
    %12 = vector.broadcast %cst_10 : f32 to vector<32x128xf32>
    %13 = arith.addf %12, %11 : vector<32x128xf32>
    %14 = arith.divf %12, %13 : vector<32x128xf32>
    %c0_11 = arith.constant 0 : index
    %c0_12 = arith.constant 0 : index
    %15 = vector.load %arg6[%c0_11, %c0_12] : memref<32x32xf32, #tpu.memory_space<vmem>>, vector<32x32xf32>
    %cst_13 = arith.constant dense<0.000000e+00> : vector<32x128xf32>
    %16 = tpu.matmul %15, %14, %cst_13 {dimension_numbers = #tpu.dot_dimension_numbers<[1], [0], [0], [1], [0, 0, 1, 1], [], []>} : vector<32x32xf32>, vector<32x128xf32>, vector<32x128xf32> -> vector<32x128xf32>
    %c0_14 = arith.constant 0 : index
    %c0_15 = arith.constant 0 : index
    %17 = vector.load %arg7[%c0_14, %c0_15] : memref<32x1xf32, #tpu.memory_space<vmem>>, vector<32x1xf32>
    %18 = vector.broadcast %17 : vector<32x1xf32> to vector<32x128xf32>
    %19 = arith.addf %16, %18 : vector<32x128xf32>
    %20 = arith.negf %19 : vector<32x128xf32>
    %21 = math.exp %20 : vector<32x128xf32>
    %cst_16 = arith.constant 1.000000e+00 : f32
    %22 = vector.broadcast %cst_16 : f32 to vector<32x128xf32>
    %23 = arith.addf %22, %21 : vector<32x128xf32>
    %24 = arith.divf %22, %23 : vector<32x128xf32>
    %c0_17 = arith.constant 0 : index
    %c0_18 = arith.constant 0 : index
    %25 = vector.load %arg8[%c0_17, %c0_18] : memref<1x32xf32, #tpu.memory_space<vmem>>, vector<1x32xf32>
    %cst_19 = arith.constant dense<0.000000e+00> : vector<1x128xf32>
    %26 = tpu.matmul %25, %24, %cst_19 {dimension_numbers = #tpu.dot_dimension_numbers<[1], [0], [0], [1], [0, 0, 1, 1], [], []>} : vector<1x32xf32>, vector<32x128xf32>, vector<1x128xf32> -> vector<1x128xf32>
    %c0_20 = arith.constant 0 : index
    %c0_21 = arith.constant 0 : index
    %27 = vector.load %arg9[%c0_20, %c0_21] : memref<1x128xf32, #tpu.memory_space<vmem>>, vector<1x128xf32>
    tpu.vector_store %arg9[%c0_20, %c0_21], %26 {strides = array<i32>} : memref<1x128xf32, #tpu.memory_space<vmem>>, vector<1x128xf32>,
    return
  }
  func.func @transform_0(%arg0: i32) -> (i32, i32) {
    %c0_i32 = arith.constant 0 : i32
    %c0_i32_0 = arith.constant 0 : i32
    return %c0_i32, %arg0 : i32, i32
  }
  func.func @transform_1(%arg0: i32) -> (i32, i32) {
    %c0_i32 = arith.constant 0 : i32
    %c0_i32_0 = arith.constant 0 : i32
    return %c0_i32, %arg0 : i32, i32
  }
  func.func @transform_2(%arg0: i32) -> (i32, i32) {
    %c0_i32 = arith.constant 0 : i32
    %c0_i32_0 = arith.constant 0 : i32
    %c0_i32_1 = arith.constant 0 : i32
    return %c0_i32, %c0_i32_0 : i32, i32
  }
  func.func @transform_3(%arg0: i32) -> (i32, i32) {
    %c0_i32 = arith.constant 0 : i32
    %c0_i32_0 = arith.constant 0 : i32
    %c0_i32_1 = arith.constant 0 : i32
    return %c0_i32, %c0_i32_0 : i32, i32
  }
  func.func @transform_4(%arg0: i32) -> (i32, i32) {
    %c0_i32 = arith.constant 0 : i32
    %c0_i32_0 = arith.constant 0 : i32
    %c0_i32_1 = arith.constant 0 : i32
    return %c0_i32, %c0_i32_0 : i32, i32
  }
  func.func @transform_5(%arg0: i32) -> (i32, i32) {
    %c0_i32 = arith.constant 0 : i32
    %c0_i32_0 = arith.constant 0 : i32
    %c0_i32_1 = arith.constant 0 : i32
    return %c0_i32, %c0_i32_0 : i32, i32
  }
  func.func @transform_6(%arg0: i32) -> (i32, i32) {
    %c0_i32 = arith.constant 0 : i32
    %c0_i32_0 = arith.constant 0 : i32
    %c0_i32_1 = arith.constant 0 : i32
    return %c0_i32, %c0_i32_0 : i32, i32
  }
  func.func @transform_7(%arg0: i32) -> (i32, i32) {
    %c0_i32 = arith.constant 0 : i32
    %c0_i32_0 = arith.constant 0 : i32
    %c0_i32_1 = arith.constant 0 : i32
    return %c0_i32, %c0_i32_0 : i32, i32
  }
  func.func @transform_8(%arg0: i32) -> (i32, i32) {
    %c0_i32 = arith.constant 0 : i32
    %c0_i32_0 = arith.constant 0 : i32
    return %c0_i32, %arg0 : i32, i32
  }
}

</mosaic_0001>

<llo_original>
// kernel: entity_embedding_forward.1
$region0: #{entity_embedding_forward.1}
  #allocation0 [shape = 'u32[]', space=smem, size = 0x4, offset = 0x4, fixed_abs, tag = 'smem constant byte address 0x4 - core index']
  #allocation1 [shape = 'u32[144,128]{1,0:T(1,128)}', space=vmem, size = 0x12000, scoped, tag = 'internal scratch']
  %s0 = inlined_call_operand.vmem [shape: f32[2,128], index: 0, kind: input, shape index: {}]
  %s1 = inlined_call_operand.vmem [shape: f32[4,128], index: 1, kind: input, shape index: {}]
  %s2 = inlined_call_operand.vmem [shape: f32[32,2], index: 2, kind: input, shape index: {}]
  %s3 = inlined_call_operand.vmem [shape: f32[32,4], index: 3, kind: input, shape index: {}]
  %s4 = inlined_call_operand.vmem [shape: f32[32,1], index: 4, kind: input, shape index: {}]
  %s5 = inlined_call_operand.vmem [shape: f32[32,32], index: 5, kind: input, shape index: {}]
  %s6 = inlined_call_operand.vmem [shape: f32[32,1], index: 6, kind: input, shape index: {}]
  %s7 = inlined_call_operand.vmem [shape: f32[1,32], index: 7, kind: input, shape index: {}]
  %s8 = inlined_call_operand.vmem [shape: f32[1,128], index: 8, kind: output, shape index: {}]
  %s9 = sld [smem:[#allocation0]]
  $region42: #{entity_embedding_forward.1} parent=0
    _
  %s11 = ssub.s32 1, %s9
  %s12 = scalar_select 0, %s11, %s9
  // Predicated region
  $region2: #{entity_embedding_forward.1} parent=0 // pred_check
    _
  $region3: #{entity_embedding_forward.1} parent=0 // pred_check_branch
    %14 = sbr.rel (0) target = $region5
  $region4: #{entity_embedding_forward.1} parent=0 // pred_region
    _
  $region5: #{entity_embedding_forward.1} parent=0 // pred_fallthru
    _
  // Predicated region
  $region6: #{entity_embedding_forward.1} parent=0 // pred_check
    _
  $region7: #{entity_embedding_forward.1} parent=0 // pred_check_branch
    %16 = sbr.rel (0) target = $region9
  $region8: #{entity_embedding_forward.1} parent=0 // pred_region
    _
  $region9: #{entity_embedding_forward.1} parent=0 // pred_fallthru
    _
  // Predicated region
  $region10: #{entity_embedding_forward.1} parent=0 // pred_check
    _
  $region11: #{entity_embedding_forward.1} parent=0 // pred_check_branch
    %18 = sbr.rel (0) target = $region13
  $region12: #{entity_embedding_forward.1} parent=0 // pred_region
    _
  $region13: #{entity_embedding_forward.1} parent=0 // pred_fallthru
    _
  // Predicated region
  $region14: #{entity_embedding_forward.1} parent=0 // pred_check
    _
  $region15: #{entity_embedding_forward.1} parent=0 // pred_check_branch
    %20 = sbr.rel (0) target = $region17
  $region16: #{entity_embedding_forward.1} parent=0 // pred_region
    _
  $region17: #{entity_embedding_forward.1} parent=0 // pred_fallthru
    _
  // Predicated region
  $region18: #{entity_embedding_forward.1} parent=0 // pred_check
    _
  $region19: #{entity_embedding_forward.1} parent=0 // pred_check_branch
    %22 = sbr.rel (0) target = $region21
  $region20: #{entity_embedding_forward.1} parent=0 // pred_region
    _
  $region21: #{entity_embedding_forward.1} parent=0 // pred_fallthru
    _
  // Predicated region
  $region22: #{entity_embedding_forward.1} parent=0 // pred_check
    _
  $region23: #{entity_embedding_forward.1} parent=0 // pred_check_branch
    %24 = sbr.rel (0) target = $region25
  $region24: #{entity_embedding_forward.1} parent=0 // pred_region
    _
  $region25: #{entity_embedding_forward.1} parent=0 // pred_fallthru
    _
  // Predicated region
  $region26: #{entity_embedding_forward.1} parent=0 // pred_check
    _
  $region27: #{entity_embedding_forward.1} parent=0 // pred_check_branch
    %26 = sbr.rel (0) target = $region29
  $region28: #{entity_embedding_forward.1} parent=0 // pred_region
    _
  $region29: #{entity_embedding_forward.1} parent=0 // pred_fallthru
    _
  // Predicated region
  $region30: #{entity_embedding_forward.1} parent=0 // pred_check
    _
  $region31: #{entity_embedding_forward.1} parent=0 // pred_check_branch
    %28 = sbr.rel (0) target = $region33
  $region32: #{entity_embedding_forward.1} parent=0 // pred_region
    _
  $region33: #{entity_embedding_forward.1} parent=0 // pred_fallthru
    _
  %v29 = vld [vmem:[%s0] sm:$0x3]
  %v30 = vld [vmem:[%s1] sm:$0xf]
  %v31 = vld [vmem:[%s2] sm:$0xff]
  %v32 = vld [vmem:[%s2 + $0x8] sm:$0xff]
  %v33 = vld [vmem:[%s2 + $0x10] sm:$0xff]
  %v34 = vld [vmem:[%s2 + $0x18] sm:$0xff]
  %v35 = vld [vmem:[%s3] sm:$0xff]
  %v36 = vld [vmem:[%s3 + $0x8] sm:$0xff]
  %v37 = vld [vmem:[%s3 + $0x10] sm:$0xff]
  %v38 = vld [vmem:[%s3 + $0x18] sm:$0xff]
  %vm39 = vcmask 31744
  %v41 = vsel %vm39, %v35, 0
  %v44 = vsel %vm39, %v36, 0
  %v47 = vsel %vm39, %v37, 0
  %v50 = vsel %vm39, %v38, 0
  %vm52 = vcmask 1043456
  %v54 = vsel %vm52, %v30, 0
  %56 = vmatprep.subr.mxu0 0.0
  %57 = vmatpush1.msra.mxu0 %v54
  %58 = vmatprep.subr.mxu0 0.0
  %59 = vmatpush1.msra.mxu0 0.0
  %60 = vmatprep.subr.mxu0 0.0
  %61 = vmatpush1.msra.mxu0 0.0
  %62 = vmatprep.subr.mxu0 0.0
  %63 = vmatpush1.msra.mxu0 0.0
  %64 = vmatprep.subr.mxu0 0.0
  %65 = vmatpush1.msra.mxu0 0.0
  %66 = vmatprep.subr.mxu0 0.0
  %67 = vmatpush1.msra.mxu0 0.0
  %68 = vmatprep.subr.mxu0 0.0
  %69 = vmatpush1.msra.mxu0 0.0
  %70 = vmatprep.subr.mxu0 0.0
  %71 = vmatpush1.msra.mxu0 0.0
  %72 = vmatprep.subr.mxu0 0.0
  %73 = vmatpush1.msra.mxu0 0.0
  %74 = vmatprep.subr.mxu0 0.0
  %75 = vmatpush1.msra.mxu0 0.0
  %76 = vmatprep.subr.mxu0 0.0
  %77 = vmatpush1.msra.mxu0 0.0
  %78 = vmatprep.subr.mxu0 0.0
  %79 = vmatpush1.msra.mxu0 0.0
  %80 = vmatprep.subr.mxu0 0.0
  %81 = vmatpush1.msra.mxu0 0.0
  %82 = vmatprep.subr.mxu0 0.0
  %83 = vmatpush1.msra.mxu0 0.0
  %84 = vmatprep.subr.mxu0 0.0
  %85 = vmatpush1.msra.mxu0 0.0
  %86 = vmatprep.subr.mxu0 0.0
  %87 = vmatpush1.msra.mxu0 0.0
  %88 = vmatprep.subr.mxu0 0.0
  %89 = vmatpush1.msra.mxu0 0.0
  %90 = vmatprep.subr.mxu0 0.0
  %91 = vmatpush1.msra.mxu0 0.0
  %92 = vmatprep.subr.mxu0 0.0
  %93 = vmatpush1.msra.mxu0 0.0
  %94 = vmatprep.subr.mxu0 0.0
  %95 = vmatpush1.msra.mxu0 0.0
  %96 = vmatprep.subr.mxu0 0.0
  %97 = vmatpush1.msra.mxu0 0.0
  %98 = vmatprep.subr.mxu0 0.0
  %99 = vmatpush1.msra.mxu0 0.0
  %100 = vmatprep.subr.mxu0 0.0
  %101 = vmatpush1.msra.mxu0 0.0
  %102 = vmatprep.subr.mxu0 0.0
  %103 = vmatpush1.msra.mxu0 0.0
  %104 = vmatprep.subr.mxu0 0.0
  %105 = vmatpush1.msra.mxu0 0.0
  %106 = vmatprep.subr.mxu0 0.0
  %107 = vmatpush1.msra.mxu0 0.0
  %108 = vmatprep.subr.mxu0 0.0
  %109 = vmatpush1.msra.mxu0 0.0
  %110 = vmatprep.subr.mxu0 0.0
  %111 = vmatpush1.msra.mxu0 0.0
  %112 = vmatprep.subr.mxu0 0.0
  %113 = vmatpush1.msra.mxu0 0.0
  %114 = vmatprep.subr.mxu0 0.0
  %115 = vmatpush1.msra.mxu0 0.0
  %116 = vmatprep.subr.mxu0 0.0
  %117 = vmatpush1.msra.mxu0 0.0
  %118 = vmatprep.subr.mxu0 0.0
  %119 = vmatpush1.msra.mxu0 0.0
  %120 = vmatprep.mubr.f32.mxu0 0.0
  %121 = vmatmul.mubr.f32.gmra.mrb[0].mxu0 %v41
  %v122 = vpop.f32.mrb[0].mxu0
  %v123 = vadd.f32 0.0, %v122
  %v124 = vpop.f32.mrb[0].mxu0
  %125 = vmatprep.mubr.f32.mxu0 0.0
  %126 = vmatmul.mubr.f32.gmra.mrb[0].mxu0 %v44
  %v127 = vpop.f32.mrb[0].mxu0
  %v128 = vadd.f32 0.0, %v127
  %v129 = vpop.f32.mrb[0].mxu0
  %130 = vmatprep.mubr.f32.mxu0 0.0
  %131 = vmatmul.mubr.f32.gmra.mrb[0].mxu0 %v47
  %v132 = vpop.f32.mrb[0].mxu0
  %v133 = vadd.f32 0.0, %v132
  %v134 = vpop.f32.mrb[0].mxu0
  %135 = vmatprep.mubr.f32.mxu0 0.0
  %136 = vmatmul.mubr.f32.gmra.mrb[0].mxu0 %v50
  %v137 = vpop.f32.mrb[0].mxu0
  %v138 = vadd.f32 0.0, %v137
  %v139 = vpop.f32.mrb[0].mxu0
  %140 = vdwg.mxu0
  %vm141 = vcmask 15360
  %v143 = vsel %vm141, %v31, 0
  %v146 = vsel %vm141, %v32, 0
  %v149 = vsel %vm141, %v33, 0
  %v152 = vsel %vm141, %v34, 0
  %vm154 = vcmask 1041408
  %v156 = vsel %vm154, %v29, 0
  %158 = vmatprep.subr.mxu0 0.0
  %159 = vmatpush1.msra.mxu0 %v156
  %160 = vmatprep.subr.mxu0 0.0
  %161 = vmatpush1.msra.mxu0 0.0
  %162 = vmatprep.subr.mxu0 0.0
  %163 = vmatpush1.msra.mxu0 0.0
  %164 = vmatprep.subr.mxu0 0.0
  %165 = vmatpush1.msra.mxu0 0.0
  %166 = vmatprep.subr.mxu0 0.0
  %167 = vmatpush1.msra.mxu0 0.0
  %168 = vmatprep.subr.mxu0 0.0
  %169 = vmatpush1.msra.mxu0 0.0
  %170 = vmatprep.subr.mxu0 0.0
  %171 = vmatpush1.msra.mxu0 0.0
  %172 = vmatprep.subr.mxu0 0.0
  %173 = vmatpush1.msra.mxu0 0.0
  %174 = vmatprep.subr.mxu0 0.0
  %175 = vmatpush1.msra.mxu0 0.0
  %176 = vmatprep.subr.mxu0 0.0
  %177 = vmatpush1.msra.mxu0 0.0
  %178 = vmatprep.subr.mxu0 0.0
  %179 = vmatpush1.msra.mxu0 0.0
  %180 = vmatprep.subr.mxu0 0.0
  %181 = vmatpush1.msra.mxu0 0.0
  %182 = vmatprep.subr.mxu0 0.0
  %183 = vmatpush1.msra.mxu0 0.0
  %184 = vmatprep.subr.mxu0 0.0
  %185 = vmatpush1.msra.mxu0 0.0
  %186 = vmatprep.subr.mxu0 0.0
  %187 = vmatpush1.msra.mxu0 0.0
  %188 = vmatprep.subr.mxu0 0.0
  %189 = vmatpush1.msra.mxu0 0.0
  %190 = vmatprep.subr.mxu0 0.0
  %191 = vmatpush1.msra.mxu0 0.0
  %192 = vmatprep.subr.mxu0 0.0
  %193 = vmatpush1.msra.mxu0 0.0
  %194 = vmatprep.subr.mxu0 0.0
  %195 = vmatpush1.msra.mxu0 0.0
  %196 = vmatprep.subr.mxu0 0.0
  %197 = vmatpush1.msra.mxu0 0.0
  %198 = vmatprep.subr.mxu0 0.0
  %199 = vmatpush1.msra.mxu0 0.0
  %200 = vmatprep.subr.mxu0 0.0
  %201 = vmatpush1.msra.mxu0 0.0
  %202 = vmatprep.subr.mxu0 0.0
  %203 = vmatpush1.msra.mxu0 0.0
  %204 = vmatprep.subr.mxu0 0.0
  %205 = vmatpush1.msra.mxu0 0.0
  %206 = vmatprep.subr.mxu0 0.0
  %207 = vmatpush1.msra.mxu0 0.0
  %208 = vmatprep.subr.mxu0 0.0
  %209 = vmatpush1.msra.mxu0 0.0
  %210 = vmatprep.subr.mxu0 0.0
  %211 = vmatpush1.msra.mxu0 0.0
  %212 = vmatprep.subr.mxu0 0.0
  %213 = vmatpush1.msra.mxu0 0.0
  %214 = vmatprep.subr.mxu0 0.0
  %215 = vmatpush1.msra.mxu0 0.0
  %216 = vmatprep.subr.mxu0 0.0
  %217 = vmatpush1.msra.mxu0 0.0
  %218 = vmatprep.subr.mxu0 0.0
  %219 = vmatpush1.msra.mxu0 0.0
  %220 = vmatprep.subr.mxu0 0.0
  %221 = vmatpush1.msra.mxu0 0.0
  %222 = vmatprep.mubr.f32.mxu0 0.0
  %223 = vmatmul.mubr.f32.gmra.mrb[0].mxu0 %v143
  %v224 = vpop.f32.mrb[0].mxu0
  %v225 = vadd.f32 %v123, %v224
  %v226 = vpop.f32.mrb[0].mxu0
  %227 = vmatprep.mubr.f32.mxu0 0.0
  %228 = vmatmul.mubr.f32.gmra.mrb[0].mxu0 %v146
  %v229 = vpop.f32.mrb[0].mxu0
  %v230 = vadd.f32 %v128, %v229
  %v231 = vpop.f32.mrb[0].mxu0
  %232 = vmatprep.mubr.f32.mxu0 0.0
  %233 = vmatmul.mubr.f32.gmra.mrb[0].mxu0 %v149
  %v234 = vpop.f32.mrb[0].mxu0
  %v235 = vadd.f32 %v133, %v234
  %v236 = vpop.f32.mrb[0].mxu0
  %237 = vmatprep.mubr.f32.mxu0 0.0
  %238 = vmatmul.mubr.f32.gmra.mrb[0].mxu0 %v152
  %v239 = vpop.f32.mrb[0].mxu0
  %v240 = vadd.f32 %v138, %v239
  %v241 = vpop.f32.mrb[0].mxu0
  %242 = vdwg.mxu0
  %v243 = vld [vmem:[%s4] sm:$0xff]
  %v244 = vld [vmem:[%s4 + $0x8] sm:$0xff]
  %v245 = vld [vmem:[%s4 + $0x10] sm:$0xff]
  %v246 = vld [vmem:[%s4 + $0x18] sm:$0xff]
  %248 = vset.pattern.permute.xlu0 0
  %249 = vperm.xlu0 %248, %v243
  %v250 = vpop.permute.xlu0 %249
  %253 = vset.pattern.permute.xlu0 0
  %254 = vperm.xlu0 %253, %v244
  %v255 = vpop.permute.xlu0 %254
  %258 = vset.pattern.permute.xlu0 0
  %259 = vperm.xlu0 %258, %v245
  %v260 = vpop.permute.xlu0 %259
  %263 = vset.pattern.permute.xlu0 0
  %264 = vperm.xlu0 %263, %v246
  %v265 = vpop.permute.xlu0 %264
  %v267 = vadd.f32 %v225, %v250
  %v268 = vadd.f32 %v230, %v255
  %v269 = vadd.f32 %v235, %v260
  %v270 = vadd.f32 %v240, %v265
  %v271 = vxor.u32 %v267, 2147483648
  %v272 = vxor.u32 %v268, 2147483648
  %v273 = vxor.u32 %v269, 2147483648
  %v274 = vxor.u32 %v270, 2147483648
  %v275 = vmul.f32 %v271, 1.442695
  %v276 = vpow.pop %v275
  %v277 = vmul.f32 %v272, 1.442695
  %v278 = vpow.pop %v277
  %v279 = vmul.f32 %v273, 1.442695
  %v280 = vpow.pop %v279
  %v281 = vmul.f32 %v274, 1.442695
  %v282 = vpow.pop %v281
  %v283 = vadd.f32 %v276, 1.0
  %v284 = vadd.f32 %v278, 1.0
  %v285 = vadd.f32 %v280, 1.0
  %v286 = vadd.f32 %v282, 1.0
  %v287 = vrcp.pop %v283
  %v288 = vmul.f32 1.0, %v287
  %v289 = vrcp.pop %v284
  %v290 = vmul.f32 1.0, %v289
  %v291 = vrcp.pop %v285
  %v292 = vmul.f32 1.0, %v291
  %v293 = vrcp.pop %v286
  %v294 = vmul.f32 1.0, %v293
  %v295 = vld [vmem:[%s5] sm:$0xff]
  %v296 = vld [vmem:[%s5 + $0x8] sm:$0xff]
  %v297 = vld [vmem:[%s5 + $0x10] sm:$0xff]
  %v298 = vld [vmem:[%s5 + $0x18] sm:$0xff]
  %v299 = vld [vmem:[%s6] sm:$0xff]
  %v300 = vld [vmem:[%s6 + $0x8] sm:$0xff]
  %v301 = vld [vmem:[%s6 + $0x10] sm:$0xff]
  %v302 = vld [vmem:[%s6 + $0x18] sm:$0xff]
  %304 = vset.pattern.permute.xlu0 0
  %305 = vperm.xlu0 %304, %v299
  %v306 = vpop.permute.xlu0 %305
  %309 = vset.pattern.permute.xlu0 0
  %310 = vperm.xlu0 %309, %v300
  %v311 = vpop.permute.xlu0 %310
  %314 = vset.pattern.permute.xlu0 0
  %315 = vperm.xlu0 %314, %v301
  %v316 = vpop.permute.xlu0 %315
  %319 = vset.pattern.permute.xlu0 0
  %320 = vperm.xlu0 %319, %v302
  %v321 = vpop.permute.xlu0 %320
  %vm323 = vcmask 261120
  %v325 = vsel %vm323, %v295, 0
  %v328 = vsel %vm323, %v296, 0
  %v331 = vsel %vm323, %v297, 0
  %v334 = vsel %vm323, %v298, 0
  %336 = vmatprep.subr.mxu0 0.0
  %337 = vmatpush1.msra.mxu0 %v288
  %338 = vmatprep.subr.mxu0 0.0
  %339 = vmatpush1.msra.mxu0 %v290
  %340 = vmatprep.subr.mxu0 0.0
  %341 = vmatpush1.msra.mxu0 %v292
  %342 = vmatprep.subr.mxu0 0.0
  %343 = vmatpush1.msra.mxu0 %v294
  %344 = vmatprep.subr.mxu0 0.0
  %345 = vmatpush1.msra.mxu0 0.0
  %346 = vmatprep.subr.mxu0 0.0
  %347 = vmatpush1.msra.mxu0 0.0
  %348 = vmatprep.subr.mxu0 0.0
  %349 = vmatpush1.msra.mxu0 0.0
  %350 = vmatprep.subr.mxu0 0.0
  %351 = vmatpush1.msra.mxu0 0.0
  %352 = vmatprep.subr.mxu0 0.0
  %353 = vmatpush1.msra.mxu0 0.0
  %354 = vmatprep.subr.mxu0 0.0
  %355 = vmatpush1.msra.mxu0 0.0
  %356 = vmatprep.subr.mxu0 0.0
  %357 = vmatpush1.msra.mxu0 0.0
  %358 = vmatprep.subr.mxu0 0.0
  %359 = vmatpush1.msra.mxu0 0.0
  %360 = vmatprep.subr.mxu0 0.0
  %361 = vmatpush1.msra.mxu0 0.0
  %362 = vmatprep.subr.mxu0 0.0
  %363 = vmatpush1.msra.mxu0 0.0
  %364 = vmatprep.subr.mxu0 0.0
  %365 = vmatpush1.msra.mxu0 0.0
  %366 = vmatprep.subr.mxu0 0.0
  %367 = vmatpush1.msra.mxu0 0.0
  %368 = vmatprep.subr.mxu0 0.0
  %369 = vmatpush1.msra.mxu0 0.0
  %370 = vmatprep.subr.mxu0 0.0
  %371 = vmatpush1.msra.mxu0 0.0
  %372 = vmatprep.subr.mxu0 0.0
  %373 = vmatpush1.msra.mxu0 0.0
  %374 = vmatprep.subr.mxu0 0.0
  %375 = vmatpush1.msra.mxu0 0.0
  %376 = vmatprep.subr.mxu0 0.0
  %377 = vmatpush1.msra.mxu0 0.0
  %378 = vmatprep.subr.mxu0 0.0
  %379 = vmatpush1.msra.mxu0 0.0
  %380 = vmatprep.subr.mxu0 0.0
  %381 = vmatpush1.msra.mxu0 0.0
  %382 = vmatprep.subr.mxu0 0.0
  %383 = vmatpush1.msra.mxu0 0.0
  %384 = vmatprep.subr.mxu0 0.0
  %385 = vmatpush1.msra.mxu0 0.0
  %386 = vmatprep.subr.mxu0 0.0
  %387 = vmatpush1.msra.mxu0 0.0
  %388 = vmatprep.subr.mxu0 0.0
  %389 = vmatpush1.msra.mxu0 0.0
  %390 = vmatprep.subr.mxu0 0.0
  %391 = vmatpush1.msra.mxu0 0.0
  %392 = vmatprep.subr.mxu0 0.0
  %393 = vmatpush1.msra.mxu0 0.0
  %394 = vmatprep.subr.mxu0 0.0
  %395 = vmatpush1.msra.mxu0 0.0
  %396 = vmatprep.subr.mxu0 0.0
  %397 = vmatpush1.msra.mxu0 0.0
  %398 = vmatprep.subr.mxu0 0.0
  %399 = vmatpush1.msra.mxu0 0.0
  %400 = vmatprep.mubr.f32.mxu0 0.0
  %401 = vmatmul.mubr.f32.gmra.mrb[0].mxu0 %v325
  %v402 = vpop.f32.mrb[0].mxu0
  %v403 = vadd.f32 %v306, %v402
  %v404 = vpop.f32.mrb[0].mxu0
  %405 = vmatprep.mubr.f32.mxu0 0.0
  %406 = vmatmul.mubr.f32.gmra.mrb[0].mxu0 %v328
  %v407 = vpop.f32.mrb[0].mxu0
  %v408 = vadd.f32 %v311, %v407
  %v409 = vpop.f32.mrb[0].mxu0
  %410 = vmatprep.mubr.f32.mxu0 0.0
  %411 = vmatmul.mubr.f32.gmra.mrb[0].mxu0 %v331
  %v412 = vpop.f32.mrb[0].mxu0
  %v413 = vadd.f32 %v316, %v412
  %v414 = vpop.f32.mrb[0].mxu0
  %415 = vmatprep.mubr.f32.mxu0 0.0
  %416 = vmatmul.mubr.f32.gmra.mrb[0].mxu0 %v334
  %v417 = vpop.f32.mrb[0].mxu0
  %v418 = vadd.f32 %v321, %v417
  %v419 = vpop.f32.mrb[0].mxu0
  %420 = vdwg.mxu0
  %v421 = vxor.u32 %v403, 2147483648
  %v422 = vxor.u32 %v408, 2147483648
  %v423 = vxor.u32 %v413, 2147483648
  %v424 = vxor.u32 %v418, 2147483648
  %v425 = vmul.f32 %v421, 1.442695
  %v426 = vpow.pop %v425
  %v427 = vmul.f32 %v422, 1.442695
  %v428 = vpow.pop %v427
  %v429 = vmul.f32 %v423, 1.442695
  %v430 = vpow.pop %v429
  %v431 = vmul.f32 %v424, 1.442695
  %v432 = vpow.pop %v431
  %v433 = vadd.f32 %v426, 1.0
  %v434 = vadd.f32 %v428, 1.0
  %v435 = vadd.f32 %v430, 1.0
  %v436 = vadd.f32 %v432, 1.0
  %v437 = vrcp.pop %v433
  %v438 = vmul.f32 1.0, %v437
  %v439 = vrcp.pop %v434
  %v440 = vmul.f32 1.0, %v439
  %v441 = vrcp.pop %v435
  %v442 = vmul.f32 1.0, %v441
  %v443 = vrcp.pop %v436
  %v444 = vmul.f32 1.0, %v443
  %v445 = vld [vmem:[%s7] sm:$0x1]
  %v447 = vsel %vm323, %v445, 0
  %449 = vmatprep.subr.mxu0 0.0
  %450 = vmatpush1.msra.mxu0 %v438
  %451 = vmatprep.subr.mxu0 0.0
  %452 = vmatpush1.msra.mxu0 %v440
  %453 = vmatprep.subr.mxu0 0.0
  %454 = vmatpush1.msra.mxu0 %v442
  %455 = vmatprep.subr.mxu0 0.0
  %456 = vmatpush1.msra.mxu0 %v444
  %457 = vmatprep.subr.mxu0 0.0
  %458 = vmatpush1.msra.mxu0 0.0
  %459 = vmatprep.subr.mxu0 0.0
  %460 = vmatpush1.msra.mxu0 0.0
  %461 = vmatprep.subr.mxu0 0.0
  %462 = vmatpush1.msra.mxu0 0.0
  %463 = vmatprep.subr.mxu0 0.0
  %464 = vmatpush1.msra.mxu0 0.0
  %465 = vmatprep.subr.mxu0 0.0
  %466 = vmatpush1.msra.mxu0 0.0
  %467 = vmatprep.subr.mxu0 0.0
  %468 = vmatpush1.msra.mxu0 0.0
  %469 = vmatprep.subr.mxu0 0.0
  %470 = vmatpush1.msra.mxu0 0.0
  %471 = vmatprep.subr.mxu0 0.0
  %472 = vmatpush1.msra.mxu0 0.0
  %473 = vmatprep.subr.mxu0 0.0
  %474 = vmatpush1.msra.mxu0 0.0
  %475 = vmatprep.subr.mxu0 0.0
  %476 = vmatpush1.msra.mxu0 0.0
  %477 = vmatprep.subr.mxu0 0.0
  %478 = vmatpush1.msra.mxu0 0.0
  %479 = vmatprep.subr.mxu0 0.0
  %480 = vmatpush1.msra.mxu0 0.0
  %481 = vmatprep.subr.mxu0 0.0
  %482 = vmatpush1.msra.mxu0 0.0
  %483 = vmatprep.subr.mxu0 0.0
  %484 = vmatpush1.msra.mxu0 0.0
  %485 = vmatprep.subr.mxu0 0.0
  %486 = vmatpush1.msra.mxu0 0.0
  %487 = vmatprep.subr.mxu0 0.0
  %488 = vmatpush1.msra.mxu0 0.0
  %489 = vmatprep.subr.mxu0 0.0
  %490 = vmatpush1.msra.mxu0 0.0
  %491 = vmatprep.subr.mxu0 0.0
  %492 = vmatpush1.msra.mxu0 0.0
  %493 = vmatprep.subr.mxu0 0.0
  %494 = vmatpush1.msra.mxu0 0.0
  %495 = vmatprep.subr.mxu0 0.0
  %496 = vmatpush1.msra.mxu0 0.0
  %497 = vmatprep.subr.mxu0 0.0
  %498 = vmatpush1.msra.mxu0 0.0
  %499 = vmatprep.subr.mxu0 0.0
  %500 = vmatpush1.msra.mxu0 0.0
  %501 = vmatprep.subr.mxu0 0.0
  %502 = vmatpush1.msra.mxu0 0.0
  %503 = vmatprep.subr.mxu0 0.0
  %504 = vmatpush1.msra.mxu0 0.0
  %505 = vmatprep.subr.mxu0 0.0
  %506 = vmatpush1.msra.mxu0 0.0
  %507 = vmatprep.subr.mxu0 0.0
  %508 = vmatpush1.msra.mxu0 0.0
  %509 = vmatprep.subr.mxu0 0.0
  %510 = vmatpush1.msra.mxu0 0.0
  %511 = vmatprep.subr.mxu0 0.0
  %512 = vmatpush1.msra.mxu0 0.0
  %513 = vmatprep.mubr.f32.mxu0 0.0
  %514 = vmatmul.mubr.f32.gmra.mrb[0].mxu0 %v447
  %v515 = vpop.f32.mrb[0].mxu0
  %v516 = vadd.f32 0.0, %v515
  %v517 = vpop.f32.mrb[0].mxu0
  %518 = vdwg.mxu0
  %519 = vst [vmem:[%s8] sm:$0x1] %v516
  // Predicated region
  $region34: #{entity_embedding_forward.1} parent=0 // pred_check
    _
  $region35: #{entity_embedding_forward.1} parent=0 // pred_check_branch
    %521 = sbr.rel (0) target = $region37
  $region36: #{entity_embedding_forward.1} parent=0 // pred_region
    _
  $region37: #{entity_embedding_forward.1} parent=0 // pred_fallthru
    _
  // Predicated region
  $region38: #{entity_embedding_forward.1} parent=0 // pred_check
    _
  $region39: #{entity_embedding_forward.1} parent=0 // pred_check_branch
    %523 = sbr.rel (0) target = $region41
  $region40: #{entity_embedding_forward.1} parent=0 // pred_region
    _
  $region41: #{entity_embedding_forward.1} parent=0 // pred_fallthru
    _

</llo_original>
